<compile_context>
chip_gen: v5e
topology: v5e:2x2
jax: 0.10.0
libtpu: 0.0.40
codegen_flags: <defaults>
</compile_context>

<pallas_src>
import numpy as np
import jax
import jax.numpy as jnp
from jax.experimental import pallas as pl
from jax.experimental.pallas import tpu as pltpu


def build_grid(resolution):
    """Same as the PyTorch reference (numpy, channels-last)."""
    ranges = [np.linspace(0.0, 1.0, num=res) for res in resolution]
    grid = np.meshgrid(*ranges, sparse=False, indexing="ij")
    grid = np.stack(grid, axis=-1)
    grid = np.reshape(grid, [resolution[0], resolution[1], -1])
    grid = np.expand_dims(grid, axis=0)
    grid = grid.astype(np.float32)
    return np.concatenate([grid, 1.0 - grid], axis=-1)  # (1, H, W, 4)


def _soft_pos_kernel(x_ref, g_ref, w_ref, b_ref, o_ref):
    # x_ref/o_ref: (B, C, T)  g_ref: (4, T)  w_ref: (C, 4)  b_ref: (C, 1)
    g = g_ref[...]            # (4, T) f32
    w = w_ref[...]            # (C, 4) f32
    # K=4 is pathologically small for the MXU -> 4 unrolled VPU broadcast-FMAs.
    pos = b_ref[...]          # (C, 1), broadcasts up on the first FMA
    pos = pos + w[:, 0:1] * g[0:1, :]
    pos = pos + w[:, 1:2] * g[1:2, :]
    pos = pos + w[:, 2:3] * g[2:3, :]
    pos = pos + w[:, 3:4] * g[3:4, :]     # (C, T) f32
    x = x_ref[...]
    if x.dtype != jnp.float32:
        x = x.astype(jnp.float32)         # add in f32, single cast on store
    # (B, C, T) + (C, T): trailing-dim broadcast, no explicit reshape needed.
    o_ref[...] = (x + pos).astype(o_ref.dtype)


def _vmem_limit_bytes():
    """Per-generation scoped VMEM request (v5e/v6e: 128 MiB phys, v7x: 64 MiB)."""
    try:
        cap = int(pltpu.get_tpu_info().vmem_capacity_bytes)
    except Exception:
        cap = 64 * 1024 * 1024  # conservative fallback (v7x physical)
    # Leave headroom for compiler scratch; never below the old 16 MiB default.
    return max(16 * 1024 * 1024, min((cap * 3) // 4, 96 * 1024 * 1024))


def _candidate_tiles(HW):
    """Lane-dense tile sizes: multiples of 128 dividing HW, plus full extent."""
    cands = {HW}
    if HW % 128 == 0:
        for t in range(128, HW + 1, 128):
            if HW % t == 0:
                cands.add(t)
    return sorted(cands)


def _pick_tile_hw(B, C, HW, itemsize, vmem_limit):
    # Double-buffered pipeline footprint per lane of tile:
    #   x tile + out tile (B*C*itemsize each) and the (4, tile) grid tile.
    per_lane = 2 * (2 * B * C * itemsize) + 2 * (4 * 4)
    fixed = 2 * (C * 4 * 4 + C * 4)            # weight + bias blocks (tiny)
    budget = int(vmem_limit * 0.8) - fixed     # keep ~20% slack
    max_lanes = max(128, budget // max(per_lane, 1))

    cands = _candidate_tiles(HW)
    fitting = [t for t in cands if t <= max_lanes]
    tile = max(fitting) if fitting else min(cands)

    # Megacore (v7x): if the whole HW fits in one big step but the resolution is
    # large, split the lane-dense HW axis so both TensorCores stream HBM.  Only
    # do this when each half-tile is still >= 2048 lanes (amortizes step cost).
    if tile == HW and HW >= 4096:
        halves = [t for t in fitting if t <= HW // 2 and t >= 2048]
        if halves:
            tile = max(halves)
    return tile


def soft_position_embed(inputs_nchw, grid4_t, weight_c4, bias, *, tile_hw=None,
                        alias_input=True):
    """inputs_nchw: (B, C, H, W); grid4_t: (4, H*W); weight_c4: (C, 4); bias: (C,)."""
    B, C, H, W = inputs_nchw.shape
    HW = H * W
    itemsize = jnp.dtype(inputs_nchw.dtype).itemsize
    vmem_limit = _vmem_limit_bytes()

    if tile_hw is None:
        tile_hw = _pick_tile_hw(B, C, HW, itemsize, vmem_limit)
    else:
        assert tile_hw == HW or (HW % tile_hw == 0 and tile_hw % 128 == 0), \
            "tile_hw must equal H*W or be a 128-multiple dividing H*W"

    x = inputs_nchw.reshape(B, C, HW)      # free reshape: stays NCHW, lane-dense
    bias2d = bias.reshape(C, 1)

    n_steps = HW // tile_hw
    grid = (n_steps,)

    # Advisory cost hint: pos projection (4 FMAs per (C,HW) elem) + streaming add.
    flops = 8 * C * HW + B * C * HW
    bytes_accessed = 2 * B * C * HW * itemsize + 4 * HW * 4 + C * 4 * 4 + C * 4

    out = pl.pallas_call(
        _soft_pos_kernel,
        out_shape=jax.ShapeDtypeStruct((B, C, HW), x.dtype),
        grid_spec=pltpu.PrefetchScalarGridSpec(
            num_scalar_prefetch=0,
            grid=grid,
            in_specs=[
                pl.BlockSpec((B, C, tile_hw), lambda m: (0, 0, m)),  # x tile
                pl.BlockSpec((4, tile_hw),    lambda m: (0, m)),     # grid tile
                pl.BlockSpec((C, 4),          lambda m: (0, 0)),     # 1x1 conv weight
                pl.BlockSpec((C, 1),          lambda m: (0, 0)),     # bias
            ],
            out_specs=pl.BlockSpec((B, C, tile_hw), lambda m: (0, 0, m)),
        ),
        compiler_params=pltpu.CompilerParams(
            dimension_semantics=("parallel",),
            vmem_limit_bytes=vmem_limit),
        cost_estimate=pl.CostEstimate(flops=flops, transcendentals=0,
                                      bytes_accessed=bytes_accessed),
        input_output_aliases=({0: 0} if alias_input else {}),
    )(x, grid4_t, weight_c4, bias2d)

    return out.reshape(B, C, H, W)


if __name__ == "__main__":
    # Module config consistent with the forward: hidden=32, resolution=(16,16)
    hidden_size = 32
    resolution = (16, 16)
    B = 2
    H, W = resolution
    HW = H * W

    # Deterministic parameter init mirroring reset_params():
    #   Conv2d(4, hidden, 1) weight: kaiming_normal_(mode='fan_out') ->
    #     std = sqrt(2 / fan_out), fan_out = hidden * 1 * 1; bias = 0.
    key = jax.random.PRNGKey(0)
    k_w, k_x = jax.random.split(key)
    std = float(np.sqrt(2.0 / hidden_size))
    # PyTorch conv weight is (hidden, 4, 1, 1); the 1x1 conv is just (hidden, 4).
    weight = jax.random.normal(k_w, (hidden_size, 4), dtype=jnp.float32) * std  # (C, 4)
    bias = jnp.zeros((hidden_size,), dtype=jnp.float32)

    # Fixed positional grid: build_grid -> (1, H, W, 4); store as (4, H*W) so it
    # matches the NCHW (channel-major, HW-last) kernel layout.  Done once at setup.
    grid_np = build_grid(resolution)                                   # (1, H, W, 4)
    grid4_t = jnp.asarray(
        np.transpose(grid_np[0], (2, 0, 1)).reshape(4, HW))            # (4, HW)

    # Example input in PyTorch NCHW layout.
    x = jax.random.normal(k_x, (B, hidden_size, H, W), dtype=jnp.float32)

    # Pure-JAX reference (same math, no Pallas), pulled to host before the
    # aliased kernel call.
    pos_ref = (weight @ grid4_t + bias[:, None]).reshape(1, hidden_size, H, W)
    ref = np.asarray(x + pos_ref)

    out = soft_position_embed(x, grid4_t, weight, bias)
    out = jax.block_until_ready(out)

    assert out.shape == x.shape
    np.testing.assert_allclose(np.asarray(out), ref, rtol=1e-5, atol=1e-5)

    print("KERNEL_OK")
</pallas_src>

<mosaic_0001>
module attributes {stable_mosaic.version = 11 : i64} {
  func.func @_soft_pos_kernel(%arg0: i32, %arg1: memref<2x32x256xf32, #tpu.memory_space<vmem>>, %arg2: memref<4x256xf32, #tpu.memory_space<vmem>>, %arg3: memref<32x4xf32, #tpu.memory_space<vmem>>, %arg4: memref<32x1xf32, #tpu.memory_space<vmem>>, %arg5: memref<2x32x256xf32, #tpu.memory_space<vmem>>) attributes {dimension_semantics = [#tpu.dimension_semantics<parallel>], iteration_bounds = array<i64: 1>, scalar_prefetch = 0 : i64, scratch_operands = 0 : i64, tpu.core_type = #tpu.core_type<tc>, window_params = [{transform_indices = @transform_0, window_bounds = array<i64: 2, 32, 256>}, {transform_indices = @transform_1, window_bounds = array<i64: 4, 256>}, {pipeline_mode = #tpu.pipeline_mode<synchronous>, transform_indices = @transform_2, window_bounds = array<i64: 32, 4>}, {pipeline_mode = #tpu.pipeline_mode<synchronous>, transform_indices = @transform_3, window_bounds = array<i64: 32, 1>}, {transform_indices = @transform_4, window_bounds = array<i64: 2, 32, 256>}]} {
    %c0 = arith.constant 0 : index
    %c0_0 = arith.constant 0 : index
    %0 = vector.load %arg2[%c0, %c0_0] : memref<4x256xf32, #tpu.memory_space<vmem>>, vector<4x256xf32>
    %c0_1 = arith.constant 0 : index
    %c0_2 = arith.constant 0 : index
    %1 = vector.load %arg3[%c0_1, %c0_2] : memref<32x4xf32, #tpu.memory_space<vmem>>, vector<32x4xf32>
    %c0_3 = arith.constant 0 : index
    %c0_4 = arith.constant 0 : index
    %2 = vector.load %arg4[%c0_3, %c0_4] : memref<32x1xf32, #tpu.memory_space<vmem>>, vector<32x1xf32>
    %3 = vector.extract_strided_slice %1 {offsets = [0, 0], sizes = [32, 1], strides = [1, 1]} : vector<32x4xf32> to vector<32x1xf32>
    %4 = vector.extract_strided_slice %0 {offsets = [0, 0], sizes = [1, 256], strides = [1, 1]} : vector<4x256xf32> to vector<1x256xf32>
    %5 = vector.broadcast %3 : vector<32x1xf32> to vector<32x256xf32>
    %6 = vector.broadcast %4 : vector<1x256xf32> to vector<32x256xf32>
    %7 = arith.mulf %5, %6 : vector<32x256xf32>
    %8 = vector.broadcast %2 : vector<32x1xf32> to vector<32x256xf32>
    %9 = arith.addf %8, %7 : vector<32x256xf32>
    %10 = vector.extract_strided_slice %1 {offsets = [0, 1], sizes = [32, 1], strides = [1, 1]} : vector<32x4xf32> to vector<32x1xf32>
    %11 = vector.extract_strided_slice %0 {offsets = [1, 0], sizes = [1, 256], strides = [1, 1]} : vector<4x256xf32> to vector<1x256xf32>
    %12 = vector.broadcast %10 : vector<32x1xf32> to vector<32x256xf32>
    %13 = vector.broadcast %11 : vector<1x256xf32> to vector<32x256xf32>
    %14 = arith.mulf %12, %13 : vector<32x256xf32>
    %15 = arith.addf %9, %14 : vector<32x256xf32>
    %16 = vector.extract_strided_slice %1 {offsets = [0, 2], sizes = [32, 1], strides = [1, 1]} : vector<32x4xf32> to vector<32x1xf32>
    %17 = vector.extract_strided_slice %0 {offsets = [2, 0], sizes = [1, 256], strides = [1, 1]} : vector<4x256xf32> to vector<1x256xf32>
    %18 = vector.broadcast %16 : vector<32x1xf32> to vector<32x256xf32>
    %19 = vector.broadcast %17 : vector<1x256xf32> to vector<32x256xf32>
    %20 = arith.mulf %18, %19 : vector<32x256xf32>
    %21 = arith.addf %15, %20 : vector<32x256xf32>
    %22 = vector.extract_strided_slice %1 {offsets = [0, 3], sizes = [32, 1], strides = [1, 1]} : vector<32x4xf32> to vector<32x1xf32>
    %23 = vector.extract_strided_slice %0 {offsets = [3, 0], sizes = [1, 256], strides = [1, 1]} : vector<4x256xf32> to vector<1x256xf32>
    %24 = vector.broadcast %22 : vector<32x1xf32> to vector<32x256xf32>
    %25 = vector.broadcast %23 : vector<1x256xf32> to vector<32x256xf32>
    %26 = arith.mulf %24, %25 : vector<32x256xf32>
    %27 = arith.addf %21, %26 : vector<32x256xf32>
    %c0_5 = arith.constant 0 : index
    %c0_6 = arith.constant 0 : index
    %c0_7 = arith.constant 0 : index
    %28 = vector.load %arg1[%c0_5, %c0_6, %c0_7] : memref<2x32x256xf32, #tpu.memory_space<vmem>>, vector<2x32x256xf32>
    %29 = vector.shape_cast %27 : vector<32x256xf32> to vector<1x32x256xf32>
    %30 = vector.broadcast %29 : vector<1x32x256xf32> to vector<2x32x256xf32>
    %31 = arith.addf %28, %30 : vector<2x32x256xf32>
    %c0_8 = arith.constant 0 : index
    %c0_9 = arith.constant 0 : index
    %c0_10 = arith.constant 0 : index
    %32 = vector.load %arg5[%c0_8, %c0_9, %c0_10] : memref<2x32x256xf32, #tpu.memory_space<vmem>>, vector<2x32x256xf32>
    tpu.vector_store %arg5[%c0_8, %c0_9, %c0_10], %31 {strides = array<i32>} : memref<2x32x256xf32, #tpu.memory_space<vmem>>, vector<2x32x256xf32>,
    return
  }
  func.func @transform_0(%arg0: i32) -> (i32, i32, i32) {
    %c0_i32 = arith.constant 0 : i32
    %c0_i32_0 = arith.constant 0 : i32
    %c0_i32_1 = arith.constant 0 : i32
    return %c0_i32, %c0_i32_0, %arg0 : i32, i32, i32
  }
  func.func @transform_1(%arg0: i32) -> (i32, i32) {
    %c0_i32 = arith.constant 0 : i32
    %c0_i32_0 = arith.constant 0 : i32
    return %c0_i32, %arg0 : i32, i32
  }
  func.func @transform_2(%arg0: i32) -> (i32, i32) {
    %c0_i32 = arith.constant 0 : i32
    %c0_i32_0 = arith.constant 0 : i32
    %c0_i32_1 = arith.constant 0 : i32
    return %c0_i32, %c0_i32_0 : i32, i32
  }
  func.func @transform_3(%arg0: i32) -> (i32, i32) {
    %c0_i32 = arith.constant 0 : i32
    %c0_i32_0 = arith.constant 0 : i32
    %c0_i32_1 = arith.constant 0 : i32
    return %c0_i32, %c0_i32_0 : i32, i32
  }
  func.func @transform_4(%arg0: i32) -> (i32, i32, i32) {
    %c0_i32 = arith.constant 0 : i32
    %c0_i32_0 = arith.constant 0 : i32
    %c0_i32_1 = arith.constant 0 : i32
    return %c0_i32, %c0_i32_0, %arg0 : i32, i32, i32
  }
}

</mosaic_0001>

<llo_original>
// kernel: tpu_custom_call.1
$region0: #{tpu_custom_call.1}
  #allocation0 [shape = 'u32[]', space=smem, size = 0x4, offset = 0x4, fixed_abs, tag = 'smem constant byte address 0x4 - core index']
  #allocation1 [shape = 'u32[72,128]{1,0:T(1,128)}', space=vmem, size = 0x9000, scoped, tag = 'internal scratch']
  %s0 = inlined_call_operand.hbm [shape: f32[2,32,256], index: 0, kind: input, shape index: {}, may-alias: {0,4}]
  %s1 = inlined_call_operand.vmem [shape: f32[4,256], index: 1, kind: input, shape index: {}]
  %s2 = inlined_call_operand.vmem [shape: f32[32,4], index: 2, kind: input, shape index: {}]
  %s3 = inlined_call_operand.vmem [shape: f32[32,1], index: 3, kind: input, shape index: {}]
  %s4 = inlined_call_operand.hbm [shape: f32[2,32,256], index: 4, kind: output, shape index: {}, may-alias: {0,4}]
  %s5 = sld [smem:[#allocation0]]
  $region30: #{tpu_custom_call.1} parent=0
    _
  %s7 = ssub.s32 1, %s5
  %s8 = scalar_select 0, %s7, %s5
  $region1: #{tpu_custom_call.1} parent=0
    #allocation2 [shape = 'u8[65536]{0}', space=vmem, size = 0x10000, scoped, tag = 'input window, operand 0, single buffered']
    #allocation3 [shape = 's32[1]{0}', space=sflag, size = 0x4, scoped, tag = 'scoped memory for tpu_custom_call.1']
    #allocation4 [shape = 's32[1]{0}', space=sflag, size = 0x4, scoped, tag = 'scoped memory for tpu_custom_call.1']
    #allocation5 [shape = 'u8[65536]{0}', space=vmem, size = 0x10000, scoped, tag = 'output window, operand 0, single buffered']
    %9 = vsyncpa [#allocation3], 0
    %10 = vsyncpa [#allocation4], 0
    // Predicated region
    $region2: #{tpu_custom_call.1} parent=1 // pred_check
      _
    $region3: #{tpu_custom_call.1} parent=1 // pred_check_branch
      %12 = sbr.rel (0) target = $region5
    $region4: #{tpu_custom_call.1} parent=1 // pred_region
      %14 = vsyncadd [#allocation3], 0
      %s15 = sshll.u32 %s0, 4
      %s16 = int_to_ptr.hbm [resolvable:$true] %s15
      %s17 = sshll.u32 [#allocation2], 4
      %s18 = int_to_ptr.vmem [resolvable:$true] %s17
      %23 = dma.hbm_to_vmem [thread:$0]  %s16, 2048, %s18, [#allocation3], 256, 256, 16
    $region5: #{tpu_custom_call.1} parent=1 // pred_fallthru
      _
    // Predicated region
    $region6: #{tpu_custom_call.1} parent=1 // pred_check
      _
    $region7: #{tpu_custom_call.1} parent=1 // pred_check_branch
      %25 = sbr.rel (0) target = $region9
    $region8: #{tpu_custom_call.1} parent=1 // pred_region
      _
    $region9: #{tpu_custom_call.1} parent=1 // pred_fallthru
      _
    // Predicated region
    $region10: #{tpu_custom_call.1} parent=1 // pred_check
      _
    $region11: #{tpu_custom_call.1} parent=1 // pred_check_branch
      %27 = sbr.rel (0) target = $region13
    $region12: #{tpu_custom_call.1} parent=1 // pred_region
      _
    $region13: #{tpu_custom_call.1} parent=1 // pred_fallthru
      _
    // Predicated region
    $region14: #{tpu_custom_call.1} parent=1 // pred_check
      _
    $region15: #{tpu_custom_call.1} parent=1 // pred_check_branch
      %29 = sbr.rel (0) target = $region17
    $region16: #{tpu_custom_call.1} parent=1 // pred_region
      _
    $region17: #{tpu_custom_call.1} parent=1 // pred_fallthru
      _
    // Predicated region
    $region18: #{tpu_custom_call.1} parent=1 // pred_check
      _
    $region19: #{tpu_custom_call.1} parent=1 // pred_check_branch
      %31 = sbr.rel (0) target = $region21
    $region20: #{tpu_custom_call.1} parent=1 // pred_region
      %33 = dma.done [#allocation3], 2048
    $region21: #{tpu_custom_call.1} parent=1 // pred_fallthru
      _
    %v34 = vld [vmem:[%s1] sm:$0xff]
    %v35 = vld [vmem:[%s2] sm:$0xff]
    %v36 = vld [vmem:[%s2 + $0x8] sm:$0xff]
    %v37 = vld [vmem:[%s2 + $0x10] sm:$0xff]
    %v38 = vld [vmem:[%s2 + $0x18] sm:$0xff]
    %v39 = vld [vmem:[%s3] sm:$0xff]
    %v40 = vld [vmem:[%s3 + $0x8] sm:$0xff]
    %v41 = vld [vmem:[%s3 + $0x10] sm:$0xff]
    %v42 = vld [vmem:[%s3 + $0x18] sm:$0xff]
    %44 = vset.pattern.permute.xlu0 0
    %45 = vperm.xlu0 %44, %v35
    %v46 = vpop.permute.xlu0 %45
    %49 = vset.pattern.permute.xlu0 0
    %50 = vperm.xlu0 %49, %v36
    %v51 = vpop.permute.xlu0 %50
    %54 = vset.pattern.permute.xlu0 0
    %55 = vperm.xlu0 %54, %v37
    %v56 = vpop.permute.xlu0 %55
    %59 = vset.pattern.permute.xlu0 0
    %60 = vperm.xlu0 %59, %v38
    %v61 = vpop.permute.xlu0 %60
    %v64 = vperm.slane %v34, 0
    %v65 = vperm.slane %v34, 4
    %v68 = vperm.slane %v64, 0
    %v69 = vperm.slane %v65, 0
    %v70 = vmul.f32 %v46, %v68
    %v71 = vmul.f32 %v46, %v69
    %v72 = vmul.f32 %v51, %v68
    %v73 = vmul.f32 %v51, %v69
    %v74 = vmul.f32 %v56, %v68
    %v75 = vmul.f32 %v56, %v69
    %v76 = vmul.f32 %v61, %v68
    %v77 = vmul.f32 %v61, %v69
    %79 = vset.pattern.permute.xlu0 0
    %80 = vperm.xlu0 %79, %v39
    %v81 = vpop.permute.xlu0 %80
    %84 = vset.pattern.permute.xlu0 0
    %85 = vperm.xlu0 %84, %v40
    %v86 = vpop.permute.xlu0 %85
    %89 = vset.pattern.permute.xlu0 0
    %90 = vperm.xlu0 %89, %v41
    %v91 = vpop.permute.xlu0 %90
    %94 = vset.pattern.permute.xlu0 0
    %95 = vperm.xlu0 %94, %v42
    %v96 = vpop.permute.xlu0 %95
    %v98 = vadd.f32 %v81, %v70
    %v99 = vadd.f32 %v81, %v71
    %v100 = vadd.f32 %v86, %v72
    %v101 = vadd.f32 %v86, %v73
    %v102 = vadd.f32 %v91, %v74
    %v103 = vadd.f32 %v91, %v75
    %v104 = vadd.f32 %v96, %v76
    %v105 = vadd.f32 %v96, %v77
    %106 = vset.pattern.permute.xlu0 1
    %107 = vperm.xlu0 %106, %v35
    %v108 = vpop.permute.xlu0 %107
    %110 = vset.pattern.permute.xlu0 1
    %111 = vperm.xlu0 %110, %v36
    %v112 = vpop.permute.xlu0 %111
    %114 = vset.pattern.permute.xlu0 1
    %115 = vperm.xlu0 %114, %v37
    %v116 = vpop.permute.xlu0 %115
    %118 = vset.pattern.permute.xlu0 1
    %119 = vperm.xlu0 %118, %v38
    %v120 = vpop.permute.xlu0 %119
    %v122 = vperm.slane %v34, 1
    %v123 = vperm.slane %v34, 5
    %v126 = vperm.slane %v122, 1
    %v127 = vperm.slane %v123, 1
    %v128 = vmul.f32 %v108, %v126
    %v129 = vmul.f32 %v108, %v127
    %v130 = vmul.f32 %v112, %v126
    %v131 = vmul.f32 %v112, %v127
    %v132 = vmul.f32 %v116, %v126
    %v133 = vmul.f32 %v116, %v127
    %v134 = vmul.f32 %v120, %v126
    %v135 = vmul.f32 %v120, %v127
    %v136 = vadd.f32 %v98, %v128
    %v137 = vadd.f32 %v99, %v129
    %v138 = vadd.f32 %v100, %v130
    %v139 = vadd.f32 %v101, %v131
    %v140 = vadd.f32 %v102, %v132
    %v141 = vadd.f32 %v103, %v133
    %v142 = vadd.f32 %v104, %v134
    %v143 = vadd.f32 %v105, %v135
    %144 = vset.pattern.permute.xlu0 2
    %145 = vperm.xlu0 %144, %v35
    %v146 = vpop.permute.xlu0 %145
    %148 = vset.pattern.permute.xlu0 2
    %149 = vperm.xlu0 %148, %v36
    %v150 = vpop.permute.xlu0 %149
    %152 = vset.pattern.permute.xlu0 2
    %153 = vperm.xlu0 %152, %v37
    %v154 = vpop.permute.xlu0 %153
    %156 = vset.pattern.permute.xlu0 2
    %157 = vperm.xlu0 %156, %v38
    %v158 = vpop.permute.xlu0 %157
    %v160 = vperm.slane %v34, 2
    %v161 = vperm.slane %v34, 6
    %v164 = vperm.slane %v160, 2
    %v165 = vperm.slane %v161, 2
    %v166 = vmul.f32 %v146, %v164
    %v167 = vmul.f32 %v146, %v165
    %v168 = vmul.f32 %v150, %v164
    %v169 = vmul.f32 %v150, %v165
    %v170 = vmul.f32 %v154, %v164
    %v171 = vmul.f32 %v154, %v165
    %v172 = vmul.f32 %v158, %v164
    %v173 = vmul.f32 %v158, %v165
    %v174 = vadd.f32 %v136, %v166
    %v175 = vadd.f32 %v137, %v167
    %v176 = vadd.f32 %v138, %v168
    %v177 = vadd.f32 %v139, %v169
    %v178 = vadd.f32 %v140, %v170
    %v179 = vadd.f32 %v141, %v171
    %v180 = vadd.f32 %v142, %v172
    %v181 = vadd.f32 %v143, %v173
    %182 = vset.pattern.permute.xlu0 3
    %183 = vperm.xlu0 %182, %v35
    %v184 = vpop.permute.xlu0 %183
    %186 = vset.pattern.permute.xlu0 3
    %187 = vperm.xlu0 %186, %v36
    %v188 = vpop.permute.xlu0 %187
    %190 = vset.pattern.permute.xlu0 3
    %191 = vperm.xlu0 %190, %v37
    %v192 = vpop.permute.xlu0 %191
    %194 = vset.pattern.permute.xlu0 3
    %195 = vperm.xlu0 %194, %v38
    %v196 = vpop.permute.xlu0 %195
    %v198 = vperm.slane %v34, 3
    %v199 = vperm.slane %v34, 7
    %v202 = vperm.slane %v198, 3
    %v203 = vperm.slane %v199, 3
    %v204 = vmul.f32 %v184, %v202
    %v205 = vmul.f32 %v184, %v203
    %v206 = vmul.f32 %v188, %v202
    %v207 = vmul.f32 %v188, %v203
    %v208 = vmul.f32 %v192, %v202
    %v209 = vmul.f32 %v192, %v203
    %v210 = vmul.f32 %v196, %v202
    %v211 = vmul.f32 %v196, %v203
    %v212 = vadd.f32 %v174, %v204
    %v213 = vadd.f32 %v175, %v205
    %v214 = vadd.f32 %v176, %v206
    %v215 = vadd.f32 %v177, %v207
    %v216 = vadd.f32 %v178, %v208
    %v217 = vadd.f32 %v179, %v209
    %v218 = vadd.f32 %v180, %v210
    %v219 = vadd.f32 %v181, %v211
    %v220 = vld [vmem:[#allocation2] sm:$0xff]
    %v221 = vld [vmem:[#allocation2 + $0x8] sm:$0xff]
    %v222 = vld [vmem:[#allocation2 + $0x10] sm:$0xff]
    %v223 = vld [vmem:[#allocation2 + $0x18] sm:$0xff]
    %v224 = vld [vmem:[#allocation2 + $0x20] sm:$0xff]
    %v225 = vld [vmem:[#allocation2 + $0x28] sm:$0xff]
    %v226 = vld [vmem:[#allocation2 + $0x30] sm:$0xff]
    %v227 = vld [vmem:[#allocation2 + $0x38] sm:$0xff]
    %v228 = vld [vmem:[#allocation2 + $0x40] sm:$0xff]
    %v229 = vld [vmem:[#allocation2 + $0x48] sm:$0xff]
    %v230 = vld [vmem:[#allocation2 + $0x50] sm:$0xff]
    %v231 = vld [vmem:[#allocation2 + $0x58] sm:$0xff]
    %v232 = vld [vmem:[#allocation2 + $0x60] sm:$0xff]
    %v233 = vld [vmem:[#allocation2 + $0x68] sm:$0xff]
    %v234 = vld [vmem:[#allocation2 + $0x70] sm:$0xff]
    %v235 = vld [vmem:[#allocation2 + $0x78] sm:$0xff]
    %v236 = vadd.f32 %v220, %v212
    %v237 = vadd.f32 %v221, %v213
    %v238 = vadd.f32 %v222, %v214
    %v239 = vadd.f32 %v223, %v215
    %v240 = vadd.f32 %v224, %v216
    %v241 = vadd.f32 %v225, %v217
    %v242 = vadd.f32 %v226, %v218
    %v243 = vadd.f32 %v227, %v219
    %v244 = vadd.f32 %v228, %v212
    %v245 = vadd.f32 %v229, %v213
    %v246 = vadd.f32 %v230, %v214
    %v247 = vadd.f32 %v231, %v215
    %v248 = vadd.f32 %v232, %v216
    %v249 = vadd.f32 %v233, %v217
    %v250 = vadd.f32 %v234, %v218
    %v251 = vadd.f32 %v235, %v219
    %252 = vst [vmem:[#allocation5] sm:$0xff] %v236
    %253 = vst [vmem:[#allocation5 + $0x8] sm:$0xff] %v237
    %254 = vst [vmem:[#allocation5 + $0x10] sm:$0xff] %v238
    %255 = vst [vmem:[#allocation5 + $0x18] sm:$0xff] %v239
    %256 = vst [vmem:[#allocation5 + $0x20] sm:$0xff] %v240
    %257 = vst [vmem:[#allocation5 + $0x28] sm:$0xff] %v241
    %258 = vst [vmem:[#allocation5 + $0x30] sm:$0xff] %v242
    %259 = vst [vmem:[#allocation5 + $0x38] sm:$0xff] %v243
    %260 = vst [vmem:[#allocation5 + $0x40] sm:$0xff] %v244
    %261 = vst [vmem:[#allocation5 + $0x48] sm:$0xff] %v245
    %262 = vst [vmem:[#allocation5 + $0x50] sm:$0xff] %v246
    %263 = vst [vmem:[#allocation5 + $0x58] sm:$0xff] %v247
    %264 = vst [vmem:[#allocation5 + $0x60] sm:$0xff] %v248
    %265 = vst [vmem:[#allocation5 + $0x68] sm:$0xff] %v249
    %266 = vst [vmem:[#allocation5 + $0x70] sm:$0xff] %v250
    %267 = vst [vmem:[#allocation5 + $0x78] sm:$0xff] %v251
    // Predicated region
    $region22: #{tpu_custom_call.1} parent=1 // pred_check
      _
    $region23: #{tpu_custom_call.1} parent=1 // pred_check_branch
      %269 = sbr.rel (0) target = $region25
    $region24: #{tpu_custom_call.1} parent=1 // pred_region
      %271 = vsyncadd [#allocation4], 0
      %s272 = sshll.u32 [#allocation5], 4
      %s273 = int_to_ptr.vmem [resolvable:$true] %s272
      %s274 = sshll.u32 %s4, 4
      %s275 = int_to_ptr.hbm [resolvable:$true] %s274
      %280 = dma.vmem_to_hbm [thread:$0]  %s273, 2048, %s275, [#allocation4], 256, 256, 16
    $region25: #{tpu_custom_call.1} parent=1 // pred_fallthru
      _
    // Predicated region
    $region26: #{tpu_custom_call.1} parent=1 // pred_check
      _
    $region27: #{tpu_custom_call.1} parent=1 // pred_check_branch
      %282 = sbr.rel (0) target = $region29
    $region28: #{tpu_custom_call.1} parent=1 // pred_region
      %284 = dma.done [#allocation4], 2048
    $region29: #{tpu_custom_call.1} parent=1 // pred_fallthru
      _
    %285 = vsyncpa [#allocation3], 1
    %286 = vsyncpa [#allocation4], 1

</llo_original>
